<compile_context>
chip_gen: v7x
topology: tpu7x:2x2x1
jax: 0.10.0
libtpu: 0.0.40
codegen_flags: <defaults>
</compile_context>

<pallas_src>
import jax
import jax.numpy as jnp
from jax.experimental import pallas as pl
from jax.experimental.pallas import tpu as pltpu

NEG_SLOPE = 0.01   # nn.LeakyReLU default negative_slope
GROUP = 10         # softmax group size from x.view(B, -1, 10)


def _leaky_relu(x):
    return jnp.where(x >= 0, x, NEG_SLOPE * x)


def _round_up(n, m):
    return ((n + m - 1) // m) * m


def mlp_softmax_kernel(x_ref, w0_ref, b0_ref, w1_ref, b1_ref, w2_ref, b2_ref,
                       o_ref):
    """One batch tile: 3 matmuls (bf16 in, f32 acc) + grouped softmax, one store."""
    # --- MLP: bf16 MXU inputs, f32 accumulation, f32 elementwise ---
    x = x_ref[...].astype(jnp.bfloat16)
    h = jnp.dot(x, w0_ref[...], preferred_element_type=jnp.float32) + b0_ref[...]
    h = _leaky_relu(h)

    h = jnp.dot(h.astype(jnp.bfloat16), w1_ref[...],
                preferred_element_type=jnp.float32) + b1_ref[...]
    h = _leaky_relu(h)

    logits = jnp.dot(h.astype(jnp.bfloat16), w2_ref[...],
                     preferred_element_type=jnp.float32) + b2_ref[...]

    # --- Grouped softmax over contiguous chunks of 10 lanes (== softmax(dim=-1)
    #     after view(B, -1, 10)).  Small static unroll over G, but results are
    #     concatenated and written with ONE lane-dense store.
    out_dim = o_ref.shape[1]
    n_groups = out_dim // GROUP
    probs = []
    for g in range(n_groups):        # G is small & static
        seg = logits[:, g * GROUP:(g + 1) * GROUP]
        m = jnp.max(seg, axis=-1, keepdims=True)
        e = jnp.exp(seg - m)
        denom = jnp.sum(e, axis=-1, keepdims=True)
        probs.append(e * pl.reciprocal(denom, approx=True))   # divide -> EUP
    o_ref[...] = jnp.concatenate(probs, axis=-1).astype(o_ref.dtype)


def multi_output_nn_forward(x, params, *, max_tile_b=512):
    """x: (B, input_dim) f32. params: (w0, b0, w1, b1, w2, b2) with W as
    (in_features, out_features) and b as (1, out_features)."""
    w0, b0, w1, b1, w2, b2 = params
    B, in_dim = x.shape
    h0, h1 = w0.shape[1], w1.shape[1]
    out_dim = w2.shape[1]
    assert out_dim % GROUP == 0, "output_dim must be a multiple of 10"
    G = out_dim // GROUP

    # Batch tile: multiple of 16 sublanes (bf16 packing), capped at max_tile_b.
    tile_b = min(max_tile_b, _round_up(B, 16))
    b_pad = _round_up(B, tile_b)
    if b_pad != B:
        x = jnp.pad(x, ((0, b_pad - B), (0, 0)))

    # Weights as bf16 storage (halves weight DMA traffic, native MXU rate).
    w0b = w0.astype(jnp.bfloat16)
    w1b = w1.astype(jnp.bfloat16)
    w2b = w2.astype(jnp.bfloat16)

    def _full(shape):
        return pl.BlockSpec(shape, lambda i: (0, 0))   # VMEM-resident across grid

    flops = 2 * b_pad * (in_dim * h0 + h0 * h1 + h1 * out_dim)
    bytes_accessed = (x.size * 4
                      + (w0b.size + w1b.size + w2b.size) * 2
                      + (b0.size + b1.size + b2.size) * 4
                      + b_pad * out_dim * 4)
    cost = pl.CostEstimate(flops=flops,
                           transcendentals=b_pad * out_dim,
                           bytes_accessed=bytes_accessed)

    out = pl.pallas_call(
        mlp_softmax_kernel,
        out_shape=jax.ShapeDtypeStruct((b_pad, out_dim), jnp.float32),
        grid_spec=pltpu.PrefetchScalarGridSpec(
            num_scalar_prefetch=0,
            grid=(b_pad // tile_b,),
            in_specs=[
                pl.BlockSpec((tile_b, in_dim), lambda i: (i, 0)),
                _full(w0b.shape), _full(b0.shape),
                _full(w1b.shape), _full(b1.shape),
                _full(w2b.shape), _full(b2.shape),
            ],
            out_specs=pl.BlockSpec((tile_b, out_dim), lambda i: (i, 0)),
        ),
        compiler_params=pltpu.CompilerParams(
            dimension_semantics=("parallel",)),
        cost_estimate=cost,
    )(x, w0b, b0, w1b, b1, w2b, b2)

    # Lane-dense slab -> (B, G, 10) view outside the kernel (free reshape).
    return out[:B].reshape(B, G, GROUP)


def init_params(key, input_dim, hidden_dims, output_dim):
    """Deterministic synthetic init (uniform ~ PyTorch Linear default scale)."""
    dims = [input_dim] + list(hidden_dims) + [output_dim]
    params = []
    for i in range(len(dims) - 1):
        fan_in, fan_out = dims[i], dims[i + 1]
        key, kw, kb = jax.random.split(key, 3)
        bound = 1.0 / (fan_in ** 0.5)
        w = jax.random.uniform(kw, (fan_in, fan_out), jnp.float32, -bound, bound)
        b = jax.random.uniform(kb, (1, fan_out), jnp.float32, -bound, bound)
        params.extend([w, b])
    return tuple(params)


def reference_forward(x, params):
    """Pure-JAX f32 reference matching the PyTorch module semantics."""
    w0, b0, w1, b1, w2, b2 = params
    h = _leaky_relu(x @ w0 + b0)
    h = _leaky_relu(h @ w1 + b1)
    logits = h @ w2 + b2
    B = x.shape[0]
    return jax.nn.softmax(logits.reshape(B, -1, GROUP), axis=-1)


if __name__ == "__main__":
    # Small shapes consistent with the module (output_dim multiple of 10).
    B, INPUT_DIM, OUTPUT_DIM = 2, 32, 40
    HIDDEN_DIMS = [64, 64]

    key = jax.random.PRNGKey(0)
    key, kx = jax.random.split(key)
    x = jax.random.normal(kx, (B, INPUT_DIM), dtype=jnp.float32)
    params = init_params(key, INPUT_DIM, HIDDEN_DIMS, OUTPUT_DIM)

    out = multi_output_nn_forward(x, params)
    out = jax.block_until_ready(out)

    ref = reference_forward(x, params)
    assert out.shape == (B, OUTPUT_DIM // GROUP, GROUP)
    # Tolerances account for bf16 matmul inputs + approx reciprocal in softmax.
    assert jnp.allclose(out, ref, rtol=0.0, atol=2e-2), "mismatch vs reference"
    # rows sum to ~1 (softmax sanity; approx reciprocal -> ~1e-3 level slack)
    assert jnp.allclose(jnp.sum(out, axis=-1), 1.0, atol=1e-2)

    print("KERNEL_OK")
</pallas_src>

<mosaic_0001>
module attributes {stable_mosaic.version = 11 : i64} {
  func.func @mlp_softmax_kernel(%arg0: i32, %arg1: memref<16x32xf32, #tpu.memory_space<vmem>>, %arg2: memref<32x64xbf16, #tpu.memory_space<vmem>>, %arg3: memref<1x64xf32, #tpu.memory_space<vmem>>, %arg4: memref<64x64xbf16, #tpu.memory_space<vmem>>, %arg5: memref<1x64xf32, #tpu.memory_space<vmem>>, %arg6: memref<64x40xbf16, #tpu.memory_space<vmem>>, %arg7: memref<1x40xf32, #tpu.memory_space<vmem>>, %arg8: memref<16x40xf32, #tpu.memory_space<vmem>>) attributes {dimension_semantics = [#tpu.dimension_semantics<parallel>], iteration_bounds = array<i64: 1>, scalar_prefetch = 0 : i64, scratch_operands = 0 : i64, tpu.core_type = #tpu.core_type<tc>, window_params = [{transform_indices = @transform_0, window_bounds = array<i64: 16, 32>}, {pipeline_mode = #tpu.pipeline_mode<synchronous>, transform_indices = @transform_1, window_bounds = array<i64: 32, 64>}, {pipeline_mode = #tpu.pipeline_mode<synchronous>, transform_indices = @transform_2, window_bounds = array<i64: 1, 64>}, {pipeline_mode = #tpu.pipeline_mode<synchronous>, transform_indices = @transform_3, window_bounds = array<i64: 64, 64>}, {pipeline_mode = #tpu.pipeline_mode<synchronous>, transform_indices = @transform_4, window_bounds = array<i64: 1, 64>}, {pipeline_mode = #tpu.pipeline_mode<synchronous>, transform_indices = @transform_5, window_bounds = array<i64: 64, 40>}, {pipeline_mode = #tpu.pipeline_mode<synchronous>, transform_indices = @transform_6, window_bounds = array<i64: 1, 40>}, {transform_indices = @transform_7, window_bounds = array<i64: 16, 40>}]} {
    %c0 = arith.constant 0 : index
    %c0_0 = arith.constant 0 : index
    %0 = vector.load %arg1[%c0, %c0_0] : memref<16x32xf32, #tpu.memory_space<vmem>>, vector<16x32xf32>
    %1 = arith.truncf %0 : vector<16x32xf32> to vector<16x32xbf16>
    %c0_1 = arith.constant 0 : index
    %c0_2 = arith.constant 0 : index
    %2 = vector.load %arg2[%c0_1, %c0_2] : memref<32x64xbf16, #tpu.memory_space<vmem>>, vector<32x64xbf16>
    %cst = arith.constant dense<0.000000e+00> : vector<16x64xf32>
    %3 = tpu.matmul %1, %2, %cst {dimension_numbers = #tpu.dot_dimension_numbers<[1], [0], [0], [1], [0, 0, 1, 1], [], []>} : vector<16x32xbf16>, vector<32x64xbf16>, vector<16x64xf32> -> vector<16x64xf32>
    %c0_3 = arith.constant 0 : index
    %c0_4 = arith.constant 0 : index
    %4 = vector.load %arg3[%c0_3, %c0_4] : memref<1x64xf32, #tpu.memory_space<vmem>>, vector<1x64xf32>
    %5 = vector.broadcast %4 : vector<1x64xf32> to vector<16x64xf32>
    %6 = arith.addf %3, %5 : vector<16x64xf32>
    %cst_5 = arith.constant 0.000000e+00 : f32
    %7 = vector.broadcast %cst_5 : f32 to vector<16x64xf32>
    %8 = arith.cmpf oge, %6, %7 : vector<16x64xf32>
    %cst_6 = arith.constant 0.00999999977 : f32
    %9 = vector.broadcast %cst_6 : f32 to vector<16x64xf32>
    %10 = arith.mulf %9, %6 : vector<16x64xf32>
    %11 = arith.select %8, %6, %10 : vector<16x64xi1>, vector<16x64xf32>
    %12 = arith.truncf %11 : vector<16x64xf32> to vector<16x64xbf16>
    %c0_7 = arith.constant 0 : index
    %c0_8 = arith.constant 0 : index
    %13 = vector.load %arg4[%c0_7, %c0_8] : memref<64x64xbf16, #tpu.memory_space<vmem>>, vector<64x64xbf16>
    %cst_9 = arith.constant dense<0.000000e+00> : vector<16x64xf32>
    %14 = tpu.matmul %12, %13, %cst_9 {dimension_numbers = #tpu.dot_dimension_numbers<[1], [0], [0], [1], [0, 0, 1, 1], [], []>} : vector<16x64xbf16>, vector<64x64xbf16>, vector<16x64xf32> -> vector<16x64xf32>
    %c0_10 = arith.constant 0 : index
    %c0_11 = arith.constant 0 : index
    %15 = vector.load %arg5[%c0_10, %c0_11] : memref<1x64xf32, #tpu.memory_space<vmem>>, vector<1x64xf32>
    %16 = vector.broadcast %15 : vector<1x64xf32> to vector<16x64xf32>
    %17 = arith.addf %14, %16 : vector<16x64xf32>
    %cst_12 = arith.constant 0.000000e+00 : f32
    %18 = vector.broadcast %cst_12 : f32 to vector<16x64xf32>
    %19 = arith.cmpf oge, %17, %18 : vector<16x64xf32>
    %cst_13 = arith.constant 0.00999999977 : f32
    %20 = vector.broadcast %cst_13 : f32 to vector<16x64xf32>
    %21 = arith.mulf %20, %17 : vector<16x64xf32>
    %22 = arith.select %19, %17, %21 : vector<16x64xi1>, vector<16x64xf32>
    %23 = arith.truncf %22 : vector<16x64xf32> to vector<16x64xbf16>
    %c0_14 = arith.constant 0 : index
    %c0_15 = arith.constant 0 : index
    %24 = vector.load %arg6[%c0_14, %c0_15] : memref<64x40xbf16, #tpu.memory_space<vmem>>, vector<64x40xbf16>
    %cst_16 = arith.constant dense<0.000000e+00> : vector<16x40xf32>
    %25 = tpu.matmul %23, %24, %cst_16 {dimension_numbers = #tpu.dot_dimension_numbers<[1], [0], [0], [1], [0, 0, 1, 1], [], []>} : vector<16x64xbf16>, vector<64x40xbf16>, vector<16x40xf32> -> vector<16x40xf32>
    %c0_17 = arith.constant 0 : index
    %c0_18 = arith.constant 0 : index
    %26 = vector.load %arg7[%c0_17, %c0_18] : memref<1x40xf32, #tpu.memory_space<vmem>>, vector<1x40xf32>
    %27 = vector.broadcast %26 : vector<1x40xf32> to vector<16x40xf32>
    %28 = arith.addf %25, %27 : vector<16x40xf32>
    %29 = vector.extract_strided_slice %28 {offsets = [0, 0], sizes = [16, 10], strides = [1, 1]} : vector<16x40xf32> to vector<16x10xf32>
    %cst_19 = arith.constant dense<0xFF800000> : vector<16xf32>
    %30 = vector.multi_reduction <maximumf>, %29, %cst_19 [1] : vector<16x10xf32> to vector<16xf32>
    %31 = vector.shape_cast %30 : vector<16xf32> to vector<16x1xf32>
    %32 = vector.broadcast %31 : vector<16x1xf32> to vector<16x10xf32>
    %33 = arith.subf %29, %32 : vector<16x10xf32>
    %34 = math.exp %33 : vector<16x10xf32>
    %cst_20 = arith.constant dense<0.000000e+00> : vector<16xf32>
    %35 = vector.multi_reduction <add>, %34, %cst_20 [1] : vector<16x10xf32> to vector<16xf32>
    %36 = vector.shape_cast %35 : vector<16xf32> to vector<16x1xf32>
    %37 = tpu.reciprocal %36 {approx = true} : vector<16x1xf32> -> vector<16x1xf32>
    %38 = vector.broadcast %37 : vector<16x1xf32> to vector<16x10xf32>
    %39 = arith.mulf %34, %38 : vector<16x10xf32>
    %40 = vector.extract_strided_slice %28 {offsets = [0, 10], sizes = [16, 10], strides = [1, 1]} : vector<16x40xf32> to vector<16x10xf32>
    %cst_21 = arith.constant dense<0xFF800000> : vector<16xf32>
    %41 = vector.multi_reduction <maximumf>, %40, %cst_21 [1] : vector<16x10xf32> to vector<16xf32>
    %42 = vector.shape_cast %41 : vector<16xf32> to vector<16x1xf32>
    %43 = vector.broadcast %42 : vector<16x1xf32> to vector<16x10xf32>
    %44 = arith.subf %40, %43 : vector<16x10xf32>
    %45 = math.exp %44 : vector<16x10xf32>
    %cst_22 = arith.constant dense<0.000000e+00> : vector<16xf32>
    %46 = vector.multi_reduction <add>, %45, %cst_22 [1] : vector<16x10xf32> to vector<16xf32>
    %47 = vector.shape_cast %46 : vector<16xf32> to vector<16x1xf32>
    %48 = tpu.reciprocal %47 {approx = true} : vector<16x1xf32> -> vector<16x1xf32>
    %49 = vector.broadcast %48 : vector<16x1xf32> to vector<16x10xf32>
    %50 = arith.mulf %45, %49 : vector<16x10xf32>
    %51 = vector.extract_strided_slice %28 {offsets = [0, 20], sizes = [16, 10], strides = [1, 1]} : vector<16x40xf32> to vector<16x10xf32>
    %cst_23 = arith.constant dense<0xFF800000> : vector<16xf32>
    %52 = vector.multi_reduction <maximumf>, %51, %cst_23 [1] : vector<16x10xf32> to vector<16xf32>
    %53 = vector.shape_cast %52 : vector<16xf32> to vector<16x1xf32>
    %54 = vector.broadcast %53 : vector<16x1xf32> to vector<16x10xf32>
    %55 = arith.subf %51, %54 : vector<16x10xf32>
    %56 = math.exp %55 : vector<16x10xf32>
    %cst_24 = arith.constant dense<0.000000e+00> : vector<16xf32>
    %57 = vector.multi_reduction <add>, %56, %cst_24 [1] : vector<16x10xf32> to vector<16xf32>
    %58 = vector.shape_cast %57 : vector<16xf32> to vector<16x1xf32>
    %59 = tpu.reciprocal %58 {approx = true} : vector<16x1xf32> -> vector<16x1xf32>
    %60 = vector.broadcast %59 : vector<16x1xf32> to vector<16x10xf32>
    %61 = arith.mulf %56, %60 : vector<16x10xf32>
    %62 = vector.extract_strided_slice %28 {offsets = [0, 30], sizes = [16, 10], strides = [1, 1]} : vector<16x40xf32> to vector<16x10xf32>
    %cst_25 = arith.constant dense<0xFF800000> : vector<16xf32>
    %63 = vector.multi_reduction <maximumf>, %62, %cst_25 [1] : vector<16x10xf32> to vector<16xf32>
    %64 = vector.shape_cast %63 : vector<16xf32> to vector<16x1xf32>
    %65 = vector.broadcast %64 : vector<16x1xf32> to vector<16x10xf32>
    %66 = arith.subf %62, %65 : vector<16x10xf32>
    %67 = math.exp %66 : vector<16x10xf32>
    %cst_26 = arith.constant dense<0.000000e+00> : vector<16xf32>
    %68 = vector.multi_reduction <add>, %67, %cst_26 [1] : vector<16x10xf32> to vector<16xf32>
    %69 = vector.shape_cast %68 : vector<16xf32> to vector<16x1xf32>
    %70 = tpu.reciprocal %69 {approx = true} : vector<16x1xf32> -> vector<16x1xf32>
    %71 = vector.broadcast %70 : vector<16x1xf32> to vector<16x10xf32>
    %72 = arith.mulf %67, %71 : vector<16x10xf32>
    %73 = tpu.concatenate %39, %50, %61, %72 in 1 : vector<16x10xf32>, vector<16x10xf32>, vector<16x10xf32>, vector<16x10xf32> -> vector<16x40xf32>
    %c0_27 = arith.constant 0 : index
    %c0_28 = arith.constant 0 : index
    %74 = vector.load %arg8[%c0_27, %c0_28] : memref<16x40xf32, #tpu.memory_space<vmem>>, vector<16x40xf32>
    tpu.vector_store %arg8[%c0_27, %c0_28], %73 {strides = array<i32>} : memref<16x40xf32, #tpu.memory_space<vmem>>, vector<16x40xf32>,
    return
  }
  func.func @transform_0(%arg0: i32) -> (i32, i32) {
    %c0_i32 = arith.constant 0 : i32
    %c0_i32_0 = arith.constant 0 : i32
    return %arg0, %c0_i32 : i32, i32
  }
  func.func @transform_1(%arg0: i32) -> (i32, i32) {
    %c0_i32 = arith.constant 0 : i32
    %c0_i32_0 = arith.constant 0 : i32
    %c0_i32_1 = arith.constant 0 : i32
    return %c0_i32, %c0_i32_0 : i32, i32
  }
  func.func @transform_2(%arg0: i32) -> (i32, i32) {
    %c0_i32 = arith.constant 0 : i32
    %c0_i32_0 = arith.constant 0 : i32
    %c0_i32_1 = arith.constant 0 : i32
    return %c0_i32, %c0_i32_0 : i32, i32
  }
  func.func @transform_3(%arg0: i32) -> (i32, i32) {
    %c0_i32 = arith.constant 0 : i32
    %c0_i32_0 = arith.constant 0 : i32
    %c0_i32_1 = arith.constant 0 : i32
    return %c0_i32, %c0_i32_0 : i32, i32
  }
  func.func @transform_4(%arg0: i32) -> (i32, i32) {
    %c0_i32 = arith.constant 0 : i32
    %c0_i32_0 = arith.constant 0 : i32
    %c0_i32_1 = arith.constant 0 : i32
    return %c0_i32, %c0_i32_0 : i32, i32
  }
  func.func @transform_5(%arg0: i32) -> (i32, i32) {
    %c0_i32 = arith.constant 0 : i32
    %c0_i32_0 = arith.constant 0 : i32
    %c0_i32_1 = arith.constant 0 : i32
    return %c0_i32, %c0_i32_0 : i32, i32
  }
  func.func @transform_6(%arg0: i32) -> (i32, i32) {
    %c0_i32 = arith.constant 0 : i32
    %c0_i32_0 = arith.constant 0 : i32
    %c0_i32_1 = arith.constant 0 : i32
    return %c0_i32, %c0_i32_0 : i32, i32
  }
  func.func @transform_7(%arg0: i32) -> (i32, i32) {
    %c0_i32 = arith.constant 0 : i32
    %c0_i32_0 = arith.constant 0 : i32
    return %arg0, %c0_i32 : i32, i32
  }
}

</mosaic_0001>

<llo_original>
// kernel: tpu_custom_call.1
$region0: #{tpu_custom_call.1}
  #allocation0 [shape = 'u32[]', space=smem, size = 0x4, offset = 0x4, fixed_abs, tag = 'smem constant byte address 0x4 - core index']
  #allocation1 [shape = 'u32[144,128]{1,0:T(1,128)}', space=vmem, size = 0x12000, scoped, tag = 'internal scratch']
  %s0 = inlined_call_operand.vmem [shape: f32[16,32], index: 0, kind: input, shape index: {}]
  %s1 = inlined_call_operand.hbm [shape: bf16[32,64], index: 1, kind: input, shape index: {}]
  %s2 = inlined_call_operand.vmem [shape: f32[1,64], index: 2, kind: input, shape index: {}]
  %s3 = inlined_call_operand.vmem [shape: bf16[64,64], index: 3, kind: input, shape index: {}]
  %s4 = inlined_call_operand.vmem [shape: f32[1,64], index: 4, kind: input, shape index: {}]
  %s5 = inlined_call_operand.vmem [shape: bf16[64,40], index: 5, kind: input, shape index: {}]
  %s6 = inlined_call_operand.vmem [shape: f32[1,40], index: 6, kind: input, shape index: {}]
  %s7 = inlined_call_operand.hbm [shape: f32[16,40], index: 7, kind: output, shape index: {}]
  %s8 = sld [smem:[#allocation0]]
  $region42: #{tpu_custom_call.1} parent=0
    _
  %s10 = ssub.s32 1, %s8
  %s11 = scalar_select 0, %s10, %s8
  $region1: #{tpu_custom_call.1} parent=0
    #allocation2 [shape = 'u8[8192]{0}', space=vmem, size = 0x2000, scoped, tag = 'input window, operand 1, single buffered']
    #allocation3 [shape = 's32[1]{0}', space=sflag, size = 0x4, scoped, tag = 'scoped memory for tpu_custom_call.1']
    #allocation4 [shape = 's32[1]{0}', space=sflag, size = 0x4, scoped, tag = 'scoped memory for tpu_custom_call.1']
    #allocation5 [shape = 'u8[8192]{0}', space=vmem, size = 0x2000, scoped, tag = 'output window, operand 0, single buffered']
    %12 = vsyncpa [#allocation3], 0
    %13 = vsyncpa [#allocation4], 0
    // Predicated region
    $region2: #{tpu_custom_call.1} parent=1 // pred_check
      _
    $region3: #{tpu_custom_call.1} parent=1 // pred_check_branch
      %15 = sbr.rel (0) target = $region5
    $region4: #{tpu_custom_call.1} parent=1 // pred_region
      _
    $region5: #{tpu_custom_call.1} parent=1 // pred_fallthru
      _
    // Predicated region
    $region6: #{tpu_custom_call.1} parent=1 // pred_check
      _
    $region7: #{tpu_custom_call.1} parent=1 // pred_check_branch
      %17 = sbr.rel (0) target = $region9
    $region8: #{tpu_custom_call.1} parent=1 // pred_region
      %s19 = ssub.s32 256, 256
      %20 = vsyncadd [#allocation3], %s19
      %s21 = sshll.u32 [#allocation2], 4
      %s22 = int_to_ptr.vmem [resolvable:$true] %s21
      %27 = dma.hbm_to_vmem [thread:$0]  %s1, 256, %s22, [#allocation3], 64, 64, 4
    $region9: #{tpu_custom_call.1} parent=1 // pred_fallthru
      _
    // Predicated region
    $region10: #{tpu_custom_call.1} parent=1 // pred_check
      _
    $region11: #{tpu_custom_call.1} parent=1 // pred_check_branch
      %29 = sbr.rel (0) target = $region13
    $region12: #{tpu_custom_call.1} parent=1 // pred_region
      _
    $region13: #{tpu_custom_call.1} parent=1 // pred_fallthru
      _
    // Predicated region
    $region14: #{tpu_custom_call.1} parent=1 // pred_check
      _
    $region15: #{tpu_custom_call.1} parent=1 // pred_check_branch
      %31 = sbr.rel (0) target = $region17
    $region16: #{tpu_custom_call.1} parent=1 // pred_region
      _
    $region17: #{tpu_custom_call.1} parent=1 // pred_fallthru
      _
    // Predicated region
    $region18: #{tpu_custom_call.1} parent=1 // pred_check
      _
    $region19: #{tpu_custom_call.1} parent=1 // pred_check_branch
      %33 = sbr.rel (0) target = $region21
    $region20: #{tpu_custom_call.1} parent=1 // pred_region
      _
    $region21: #{tpu_custom_call.1} parent=1 // pred_fallthru
      _
    // Predicated region
    $region22: #{tpu_custom_call.1} parent=1 // pred_check
      _
    $region23: #{tpu_custom_call.1} parent=1 // pred_check_branch
      %35 = sbr.rel (0) target = $region25
    $region24: #{tpu_custom_call.1} parent=1 // pred_region
      _
    $region25: #{tpu_custom_call.1} parent=1 // pred_fallthru
      _
    // Predicated region
    $region26: #{tpu_custom_call.1} parent=1 // pred_check
      _
    $region27: #{tpu_custom_call.1} parent=1 // pred_check_branch
      %37 = sbr.rel (0) target = $region29
    $region28: #{tpu_custom_call.1} parent=1 // pred_region
      _
    $region29: #{tpu_custom_call.1} parent=1 // pred_fallthru
      _
    // Predicated region
    $region30: #{tpu_custom_call.1} parent=1 // pred_check
      _
    $region31: #{tpu_custom_call.1} parent=1 // pred_check_branch
      %39 = sbr.rel (0) target = $region33
    $region32: #{tpu_custom_call.1} parent=1 // pred_region
      %40 = dma.done [#allocation3], 256
    $region33: #{tpu_custom_call.1} parent=1 // pred_fallthru
      _
    %v42 = vld [vmem:[%s0] sm:$0xff]
    %v43 = vld [vmem:[%s0 + $0x8] sm:$0xff]
    %v44 = vpack.c.bf16 %v43, %v42
    %v45 = vld [vmem:[#allocation2] sm:$0xf]
    %v46 = vld [vmem:[#allocation2 + $0x4] sm:$0xf]
    %v47 = vld [vmem:[#allocation2 + $0x8] sm:$0xf]
    %v48 = vld [vmem:[#allocation2 + $0xc] sm:$0xf]
    %v49 = vld [vmem:[%s2] sm:$0x1]
    %v51 = vlaneseq
    %v52 = vshrl.u32 %v51, 7
    %v53 = vsub.s32 0, %v52
    %v54 = vrot.slane %v49, %v53
    %v60 = vunpack.c.l.b16 %v45
    %v61 = vunpack.c.l.b16 %v46
    %v62 = vunpack.c.l.b16 %v47
    %v63 = vunpack.c.l.b16 %v48
    %v64 = vpack.c.b16 %v61, %v60
    %v65 = vpack.c.b16 %v63, %v62
    %vm68 = vcmask 261120
    %v70 = vsel %vm68, %v44, 0
    %72 = vmatprep.subr.bf16.mxu0 0
    %73 = vmatpush1.bf16.msra.mxu0 %v64
    %74 = vmatprep.subr.bf16.mxu0 0
    %75 = vmatpush1.bf16.msra.mxu0 %v65
    %76 = vmatprep.subr.bf16.mxu0 0
    %77 = vmatpush1.bf16.msra.mxu0 0
    %78 = vmatprep.subr.bf16.mxu0 0
    %79 = vmatpush1.bf16.msra.mxu0 0
    %80 = vmatprep.subr.bf16.mxu0 0
    %81 = vmatpush1.bf16.msra.mxu0 0
    %82 = vmatprep.subr.bf16.mxu0 0
    %83 = vmatpush1.bf16.msra.mxu0 0
    %84 = vmatprep.subr.bf16.mxu0 0
    %85 = vmatpush1.bf16.msra.mxu0 0
    %86 = vmatprep.subr.bf16.mxu0 0
    %87 = vmatpush1.bf16.msra.mxu0 0
    %88 = vmatprep.subr.bf16.mxu0 0
    %89 = vmatpush1.bf16.msra.mxu0 0
    %90 = vmatprep.subr.bf16.mxu0 0
    %91 = vmatpush1.bf16.msra.mxu0 0
    %92 = vmatprep.subr.bf16.mxu0 0
    %93 = vmatpush1.bf16.msra.mxu0 0
    %94 = vmatprep.subr.bf16.mxu0 0
    %95 = vmatpush1.bf16.msra.mxu0 0
    %96 = vmatprep.subr.bf16.mxu0 0
    %97 = vmatpush1.bf16.msra.mxu0 0
    %98 = vmatprep.subr.bf16.mxu0 0
    %99 = vmatpush1.bf16.msra.mxu0 0
    %100 = vmatprep.subr.bf16.mxu0 0
    %101 = vmatpush1.bf16.msra.mxu0 0
    %102 = vmatprep.subr.bf16.mxu0 0
    %103 = vmatpush1.bf16.msra.mxu0 0
    %104 = vmatprep.mubr.bf16.mxu0 0
    %105 = vmatmul.mubr.bf16.gmra.mrb[0].mxu0 %v70
    %v106 = vpop.f32.mrb[0].mxu0
    %v107 = vadd.f32 %v54, %v106
    %v108 = vpop.f32.mrb[0].mxu0
    %v109 = vpop.f32.mrb[0].mxu0
    %v110 = vadd.f32 %v54, %v109
    %v111 = vpop.f32.mrb[0].mxu0
    %112 = vdwg.mxu0
    %vm113 = vcmp.ge.f32.partialorder %v107, 0.0
    %vm114 = vcmp.ge.f32.partialorder %v110, 0.0
    %v115 = vmul.f32 %v107, 0.01
    %v116 = vmul.f32 %v110, 0.01
    %v117 = vsel %vm113, %v107, %v115
    %v118 = vsel %vm114, %v110, %v116
    %v119 = vpack.c.bf16 %v118, %v117
    %v120 = vld [vmem:[%s3] sm:$0xf]
    %v121 = vld [vmem:[%s3 + $0x4] sm:$0xf]
    %v122 = vld [vmem:[%s3 + $0x8] sm:$0xf]
    %v123 = vld [vmem:[%s3 + $0xc] sm:$0xf]
    %v124 = vld [vmem:[%s3 + $0x10] sm:$0xf]
    %v125 = vld [vmem:[%s3 + $0x14] sm:$0xf]
    %v126 = vld [vmem:[%s3 + $0x18] sm:$0xf]
    %v127 = vld [vmem:[%s3 + $0x1c] sm:$0xf]
    %v128 = vld [vmem:[%s4] sm:$0x1]
    %v130 = vlaneseq
    %v131 = vshrl.u32 %v130, 7
    %v132 = vsub.s32 0, %v131
    %v133 = vrot.slane %v128, %v132
    %v143 = vunpack.c.l.b16 %v120
    %v144 = vunpack.c.l.b16 %v121
    %v145 = vunpack.c.l.b16 %v122
    %v146 = vunpack.c.l.b16 %v123
    %v147 = vunpack.c.l.b16 %v124
    %v148 = vunpack.c.l.b16 %v125
    %v149 = vunpack.c.l.b16 %v126
    %v150 = vunpack.c.l.b16 %v127
    %v151 = vpack.c.b16 %v144, %v143
    %v152 = vpack.c.b16 %v146, %v145
    %v153 = vpack.c.b16 %v148, %v147
    %v154 = vpack.c.b16 %v150, %v149
    %vm159 = vcmask 523264
    %v161 = vsel %vm159, %v119, 0
    %163 = vmatprep.subr.bf16.mxu0 0
    %164 = vmatpush1.bf16.msra.mxu0 %v151
    %165 = vmatprep.subr.bf16.mxu0 0
    %166 = vmatpush1.bf16.msra.mxu0 %v152
    %167 = vmatprep.subr.bf16.mxu0 0
    %168 = vmatpush1.bf16.msra.mxu0 %v153
    %169 = vmatprep.subr.bf16.mxu0 0
    %170 = vmatpush1.bf16.msra.mxu0 %v154
    %171 = vmatprep.subr.bf16.mxu0 0
    %172 = vmatpush1.bf16.msra.mxu0 0
    %173 = vmatprep.subr.bf16.mxu0 0
    %174 = vmatpush1.bf16.msra.mxu0 0
    %175 = vmatprep.subr.bf16.mxu0 0
    %176 = vmatpush1.bf16.msra.mxu0 0
    %177 = vmatprep.subr.bf16.mxu0 0
    %178 = vmatpush1.bf16.msra.mxu0 0
    %179 = vmatprep.subr.bf16.mxu0 0
    %180 = vmatpush1.bf16.msra.mxu0 0
    %181 = vmatprep.subr.bf16.mxu0 0
    %182 = vmatpush1.bf16.msra.mxu0 0
    %183 = vmatprep.subr.bf16.mxu0 0
    %184 = vmatpush1.bf16.msra.mxu0 0
    %185 = vmatprep.subr.bf16.mxu0 0
    %186 = vmatpush1.bf16.msra.mxu0 0
    %187 = vmatprep.subr.bf16.mxu0 0
    %188 = vmatpush1.bf16.msra.mxu0 0
    %189 = vmatprep.subr.bf16.mxu0 0
    %190 = vmatpush1.bf16.msra.mxu0 0
    %191 = vmatprep.subr.bf16.mxu0 0
    %192 = vmatpush1.bf16.msra.mxu0 0
    %193 = vmatprep.subr.bf16.mxu0 0
    %194 = vmatpush1.bf16.msra.mxu0 0
    %195 = vmatprep.mubr.bf16.mxu0 0
    %196 = vmatmul.mubr.bf16.gmra.mrb[0].mxu0 %v161
    %v197 = vpop.f32.mrb[0].mxu0
    %v198 = vadd.f32 %v133, %v197
    %v199 = vpop.f32.mrb[0].mxu0
    %v200 = vpop.f32.mrb[0].mxu0
    %v201 = vadd.f32 %v133, %v200
    %v202 = vpop.f32.mrb[0].mxu0
    %203 = vdwg.mxu0
    %vm204 = vcmp.ge.f32.partialorder %v198, 0.0
    %vm205 = vcmp.ge.f32.partialorder %v201, 0.0
    %v206 = vmul.f32 %v198, 0.01
    %v207 = vmul.f32 %v201, 0.01
    %v208 = vsel %vm204, %v198, %v206
    %v209 = vsel %vm205, %v201, %v207
    %v210 = vpack.c.bf16 %v209, %v208
    %v211 = vld [vmem:[%s5] sm:$0xf]
    %v212 = vld [vmem:[%s5 + $0x4] sm:$0xf]
    %v213 = vld [vmem:[%s5 + $0x8] sm:$0xf]
    %v214 = vld [vmem:[%s5 + $0xc] sm:$0xf]
    %v215 = vld [vmem:[%s5 + $0x10] sm:$0xf]
    %v216 = vld [vmem:[%s5 + $0x14] sm:$0xf]
    %v217 = vld [vmem:[%s5 + $0x18] sm:$0xf]
    %v218 = vld [vmem:[%s5 + $0x1c] sm:$0xf]
    %v219 = vld [vmem:[%s6] sm:$0x1]
    %v221 = vlaneseq
    %v222 = vshrl.u32 %v221, 7
    %v223 = vsub.s32 0, %v222
    %v224 = vrot.slane %v219, %v223
    %v234 = vunpack.c.l.b16 %v211
    %v235 = vunpack.c.l.b16 %v212
    %v236 = vunpack.c.l.b16 %v213
    %v237 = vunpack.c.l.b16 %v214
    %v238 = vunpack.c.l.b16 %v215
    %v239 = vunpack.c.l.b16 %v216
    %v240 = vunpack.c.l.b16 %v217
    %v241 = vunpack.c.l.b16 %v218
    %v242 = vpack.c.b16 %v235, %v234
    %v243 = vpack.c.b16 %v237, %v236
    %v244 = vpack.c.b16 %v239, %v238
    %v245 = vpack.c.b16 %v241, %v240
    %v251 = vsel %vm159, %v210, 0
    %253 = vmatprep.subr.bf16.mxu0 0
    %254 = vmatpush1.bf16.msra.mxu0 %v242
    %255 = vmatprep.subr.bf16.mxu0 0
    %256 = vmatpush1.bf16.msra.mxu0 %v243
    %257 = vmatprep.subr.bf16.mxu0 0
    %258 = vmatpush1.bf16.msra.mxu0 %v244
    %259 = vmatprep.subr.bf16.mxu0 0
    %260 = vmatpush1.bf16.msra.mxu0 %v245
    %261 = vmatprep.subr.bf16.mxu0 0
    %262 = vmatpush1.bf16.msra.mxu0 0
    %263 = vmatprep.subr.bf16.mxu0 0
    %264 = vmatpush1.bf16.msra.mxu0 0
    %265 = vmatprep.subr.bf16.mxu0 0
    %266 = vmatpush1.bf16.msra.mxu0 0
    %267 = vmatprep.subr.bf16.mxu0 0
    %268 = vmatpush1.bf16.msra.mxu0 0
    %269 = vmatprep.subr.bf16.mxu0 0
    %270 = vmatpush1.bf16.msra.mxu0 0
    %271 = vmatprep.subr.bf16.mxu0 0
    %272 = vmatpush1.bf16.msra.mxu0 0
    %273 = vmatprep.subr.bf16.mxu0 0
    %274 = vmatpush1.bf16.msra.mxu0 0
    %275 = vmatprep.subr.bf16.mxu0 0
    %276 = vmatpush1.bf16.msra.mxu0 0
    %277 = vmatprep.subr.bf16.mxu0 0
    %278 = vmatpush1.bf16.msra.mxu0 0
    %279 = vmatprep.subr.bf16.mxu0 0
    %280 = vmatpush1.bf16.msra.mxu0 0
    %281 = vmatprep.subr.bf16.mxu0 0
    %282 = vmatpush1.bf16.msra.mxu0 0
    %283 = vmatprep.subr.bf16.mxu0 0
    %284 = vmatpush1.bf16.msra.mxu0 0
    %285 = vmatprep.mubr.bf16.mxu0 0
    %286 = vmatmul.mubr.bf16.gmra.mrb[0].mxu0 %v251
    %v287 = vpop.f32.mrb[0].mxu0
    %v288 = vadd.f32 %v224, %v287
    %v289 = vpop.f32.mrb[0].mxu0
    %v290 = vpop.f32.mrb[0].mxu0
    %v291 = vadd.f32 %v224, %v290
    %v292 = vpop.f32.mrb[0].mxu0
    %293 = vdwg.mxu0
    %vm294 = vcmask 80896
    %v295 = vsel %vm294, %v288, -inf
    %296 = vmax.xlane.f32.xlu0 %v295
    %v297 = vpop.xlane.xlu0 %296
    %v298 = vsel %vm294, %v291, -inf
    %299 = vmax.xlane.f32.xlu0 %v298
    %v300 = vpop.xlane.xlu0 %299
    %v301 = vsub.f32 %v288, %v297
    %v302 = vsub.f32 %v291, %v300
    %v303 = vmul.f32 %v301, 1.442695
    %v304 = vpow.pop %v303
    %v305 = vmul.f32 %v302, 1.442695
    %v306 = vpow.pop %v305
    %v307 = vsel %vm294, %v304, 0.0
    %308 = vadd.xlane.f32.xlu0 %v307
    %v309 = vpop.xlane.xlu0 %308
    %v310 = vsel %vm294, %v306, 0.0
    %311 = vadd.xlane.f32.xlu0 %v310
    %v312 = vpop.xlane.xlu0 %311
    %v313 = vrcp.pop %v309
    %v314 = vrcp.pop %v312
    %v315 = vmul.f32 %v304, %v313
    %v316 = vmul.f32 %v306, %v314
    %vm317 = vcmask 162896
    %v318 = vsel %vm317, %v288, -inf
    %319 = vmax.xlane.f32.xlu0 %v318
    %v320 = vpop.xlane.xlu0 %319
    %v321 = vsel %vm317, %v291, -inf
    %322 = vmax.xlane.f32.xlu0 %v321
    %v323 = vpop.xlane.xlu0 %322
    %v324 = vsub.f32 %v288, %v320
    %v325 = vsub.f32 %v291, %v323
    %v326 = vmul.f32 %v324, 1.442695
    %v327 = vpow.pop %v326
    %v328 = vmul.f32 %v325, 1.442695
    %v329 = vpow.pop %v328
    %332 = vrot.lane.b32.xlu0 %v327, 118
    %v333 = vpop.permute.xlu0 %332
    %334 = vrot.lane.b32.xlu0 %v329, 118
    %v335 = vpop.permute.xlu0 %334
    %v338 = vsel %vm294, %v333, 0.0
    %339 = vadd.xlane.f32.xlu0 %v338
    %v340 = vpop.xlane.xlu0 %339
    %v341 = vsel %vm294, %v335, 0.0
    %342 = vadd.xlane.f32.xlu0 %v341
    %v343 = vpop.xlane.xlu0 %342
    %v344 = vrcp.pop %v340
    %v345 = vrcp.pop %v343
    %v346 = vmul.f32 %v327, %v344
    %v347 = vmul.f32 %v329, %v345
    %vm348 = vcmask 244896
    %v349 = vsel %vm348, %v288, -inf
    %350 = vmax.xlane.f32.xlu0 %v349
    %v351 = vpop.xlane.xlu0 %350
    %v352 = vsel %vm348, %v291, -inf
    %353 = vmax.xlane.f32.xlu0 %v352
    %v354 = vpop.xlane.xlu0 %353
    %v355 = vsub.f32 %v288, %v351
    %v356 = vsub.f32 %v291, %v354
    %v357 = vmul.f32 %v355, 1.442695
    %v358 = vpow.pop %v357
    %v359 = vmul.f32 %v356, 1.442695
    %v360 = vpow.pop %v359
    %363 = vrot.lane.b32.xlu0 %v358, 108
    %v364 = vpop.permute.xlu0 %363
    %365 = vrot.lane.b32.xlu0 %v360, 108
    %v366 = vpop.permute.xlu0 %365
    %v369 = vsel %vm294, %v364, 0.0
    %370 = vadd.xlane.f32.xlu0 %v369
    %v371 = vpop.xlane.xlu0 %370
    %v372 = vsel %vm294, %v366, 0.0
    %373 = vadd.xlane.f32.xlu0 %v372
    %v374 = vpop.xlane.xlu0 %373
    %v375 = vrcp.pop %v371
    %v376 = vrcp.pop %v374
    %v377 = vmul.f32 %v358, %v375
    %v378 = vmul.f32 %v360, %v376
    %vm379 = vcmask 326896
    %v380 = vsel %vm379, %v288, -inf
    %381 = vmax.xlane.f32.xlu0 %v380
    %v382 = vpop.xlane.xlu0 %381
    %v383 = vsel %vm379, %v291, -inf
    %384 = vmax.xlane.f32.xlu0 %v383
    %v385 = vpop.xlane.xlu0 %384
    %v386 = vsub.f32 %v288, %v382
    %v387 = vsub.f32 %v291, %v385
    %v388 = vmul.f32 %v386, 1.442695
    %v389 = vpow.pop %v388
    %v390 = vmul.f32 %v387, 1.442695
    %v391 = vpow.pop %v390
    %394 = vrot.lane.b32.xlu0 %v389, 98
    %v395 = vpop.permute.xlu0 %394
    %396 = vrot.lane.b32.xlu0 %v391, 98
    %v397 = vpop.permute.xlu0 %396
    %v400 = vsel %vm294, %v395, 0.0
    %401 = vadd.xlane.f32.xlu0 %v400
    %v402 = vpop.xlane.xlu0 %401
    %v403 = vsel %vm294, %v397, 0.0
    %404 = vadd.xlane.f32.xlu0 %v403
    %v405 = vpop.xlane.xlu0 %404
    %v406 = vrcp.pop %v402
    %v407 = vrcp.pop %v405
    %v408 = vmul.f32 %v389, %v406
    %v409 = vmul.f32 %v391, %v407
    %v410 = vsel %vm294, %v315, %v346
    %v411 = vsel %vm294, %v316, %v347
    %vm412 = vcmask 162816
    %v413 = vsel %vm412, %v410, %v377
    %v414 = vsel %vm412, %v411, %v378
    %vm415 = vcmask 244736
    %v416 = vsel %vm415, %v413, %v408
    %v417 = vsel %vm415, %v414, %v409
    %vm418 = vcmask 326656
    %419 = vst.msk [vmem:[#allocation5] sm:$0xff] %vm418, %v416
    %420 = vst.msk [vmem:[#allocation5 + $0x8] sm:$0xff] %vm418, %v417
    // Predicated region
    $region34: #{tpu_custom_call.1} parent=1 // pred_check
      _
    $region35: #{tpu_custom_call.1} parent=1 // pred_check_branch
      %422 = sbr.rel (0) target = $region37
    $region36: #{tpu_custom_call.1} parent=1 // pred_region
      %s424 = ssub.s32 256, 256
      %425 = vsyncadd [#allocation4], %s424
      %s426 = sshll.u32 [#allocation5], 4
      %s427 = int_to_ptr.vmem [resolvable:$true] %s426
      %432 = dma.vmem_to_hbm [thread:$0]  %s427, 256, %s7, [#allocation4], 128, 128, 8
    $region37: #{tpu_custom_call.1} parent=1 // pred_fallthru
      _
    // Predicated region
    $region38: #{tpu_custom_call.1} parent=1 // pred_check
      _
    $region39: #{tpu_custom_call.1} parent=1 // pred_check_branch
      %434 = sbr.rel (0) target = $region41
    $region40: #{tpu_custom_call.1} parent=1 // pred_region
      %435 = dma.done [#allocation4], 256
    $region41: #{tpu_custom_call.1} parent=1 // pred_fallthru
      _
    %436 = vsyncpa [#allocation3], 1
    %437 = vsyncpa [#allocation4], 1

</llo_original>
